<compile_context>
chip_gen: v7x
topology: tpu7x:2x2x1
jax: 0.10.0
libtpu: 0.0.40
codegen_flags: <defaults>
</compile_context>

<pallas_src>
import jax
import jax.numpy as jnp
from jax.experimental import pallas as pl
from jax.experimental.pallas import tpu as pltpu


# ----------------------------------------------------------------------------
# Fused kernel: L x [GINConv(eps=0) -> ReLU -> BatchNorm1d] + per-layer
# global_add_pool (concatenated) + bias-free prototypes Linear.
# ----------------------------------------------------------------------------
def _make_fused_kernel(num_layers, num_graphs, hidden_dim, eps=1e-5):
    def kernel(*refs):
        batch_ref = refs[0]                       # [1, N] int32 graph ids
        a_ref = refs[1]                           # [N, N] bf16 adjacency
        x_ref = refs[2]                           # [N, F] f32 node features
        layer_refs = refs[3:3 + 4 * num_layers]   # (w1, b1, w2, b2) per layer
        proto_w_ref = refs[3 + 4 * num_layers]    # [L*H, K] f32
        y_ref = refs[3 + 4 * num_layers + 1]      # [G, L*H] f32 output
        proto_ref = refs[3 + 4 * num_layers + 2]  # [G, K]   f32 output

        n = x_ref.shape[0]
        a_bf = a_ref[...]                         # loaded once, reused by all layers

        # One-hot pooling matrix [G, N] built in-kernel from batch ids.
        graph_ids = jax.lax.broadcasted_iota(jnp.int32, (num_graphs, n), 0)
        pool = jnp.where(batch_ref[...] == graph_ids, 1.0, 0.0).astype(jnp.bfloat16)

        def mxu(a, b):  # bf16 MXU operands, f32 accumulation
            return jnp.dot(a.astype(jnp.bfloat16), b.astype(jnp.bfloat16),
                           preferred_element_type=jnp.float32)

        h = x_ref[...]                            # f32 [N, F]
        for l in range(num_layers):
            w1 = layer_refs[4 * l][...]
            b1 = layer_refs[4 * l + 1][...]
            w2 = layer_refs[4 * l + 2][...]
            b2 = layer_refs[4 * l + 3][...]
            # GINConv, eps=0:  MLP(x + A @ x),  MLP = Linear -> ReLU -> Linear
            agg = h + mxu(a_bf, h)
            z = jnp.maximum(mxu(agg, w1) + b1, 0.0)
            z = jnp.maximum(mxu(z, w2) + b2, 0.0)             # outer F.relu(conv(x))
            # BatchNorm1d (training-mode batch stats, weight=1, bias=0), f32
            mean = jnp.mean(z, axis=0, keepdims=True)
            var = jnp.mean((z - mean) ** 2, axis=0, keepdims=True)
            h = (z - mean) * jax.lax.rsqrt(var + eps)
            # global_add_pool for this layer -> lane slab [G, L*H]
            y_ref[:, l * hidden_dim:(l + 1) * hidden_dim] = mxu(pool, h)

        # prototypes = Linear(L*H, K, bias=False) on the pooled embedding
        proto_ref[...] = mxu(y_ref[...], proto_w_ref[...])

    return kernel


# ----------------------------------------------------------------------------
# Parameter construction (matches init_emb: xavier_uniform weights, zero
# biases; PyTorch weight [out, in] stored transposed as [in, out]).
# ----------------------------------------------------------------------------
def xavier_uniform_t(key, fan_in, fan_out):
    bound = (6.0 / (fan_in + fan_out)) ** 0.5
    return jax.random.uniform(key, (fan_in, fan_out), jnp.float32, -bound, bound)


def make_params(key, num_features, hidden_dim, num_gc_layers, nmb_prototypes):
    embedding_dim = hidden_dim * num_gc_layers
    layers = []
    for i in range(num_gc_layers):
        f_in = num_features if i == 0 else hidden_dim
        key, k1, k2 = jax.random.split(key, 3)
        layers.append(dict(
            w1=xavier_uniform_t(k1, f_in, hidden_dim),
            b1=jnp.zeros((1, hidden_dim), jnp.float32),
            w2=xavier_uniform_t(k2, hidden_dim, hidden_dim),
            b2=jnp.zeros((1, hidden_dim), jnp.float32),
        ))
    key, kp = jax.random.split(key)
    proto_w_t = xavier_uniform_t(kp, embedding_dim, nmb_prototypes)  # bias=False
    return dict(encoder=layers, proto_w_t=proto_w_t)


# ----------------------------------------------------------------------------
# simclr.forward
# ----------------------------------------------------------------------------
def simclr_forward(params, x, edge_index, batch, num_graphs):
    n = batch.shape[0]
    if x is None:
        x = jnp.ones((n, 1), jnp.float32)

    layers = params["encoder"]
    num_layers = len(layers)
    hidden = layers[0]["w2"].shape[1]
    n_proto = params["proto_w_t"].shape[1]
    emb = num_layers * hidden

    # Dense adjacency in bf16 (exact for small integer edge multiplicities):
    # messages flow src (row 0) -> dst (row 1), A[dst, src] += 1.
    a = (jnp.zeros((n, n), jnp.float32)
         .at[edge_index[1], edge_index[0]].add(1.0)
         .astype(jnp.bfloat16))
    batch_2d = batch.astype(jnp.int32).reshape(1, n)

    inputs = [batch_2d, a, x]
    for layer in layers:
        inputs += [layer["w1"], layer["b1"], layer["w2"], layer["b2"]]
    inputs.append(params["proto_w_t"])

    # Advisory cost estimate for XLA's scheduler.
    flops = 0
    fi = x.shape[1]
    for _ in range(num_layers):
        flops += 2 * n * n * fi                  # A @ h
        flops += 2 * n * fi * hidden             # Linear 1
        flops += 2 * n * hidden * hidden         # Linear 2
        flops += 2 * num_graphs * n * hidden     # global_add_pool
        fi = hidden
    flops += 2 * num_graphs * emb * n_proto      # prototypes
    out_bytes = 4 * num_graphs * (emb + n_proto)
    bytes_accessed = sum(int(t.size) * t.dtype.itemsize for t in inputs) + out_bytes

    kernel = _make_fused_kernel(num_layers, num_graphs, hidden)
    vmem_spec = pl.BlockSpec(memory_space=pltpu.MemorySpace.VMEM)

    y, proto = pl.pallas_call(
        kernel,
        out_shape=(jax.ShapeDtypeStruct((num_graphs, emb), jnp.float32),
                   jax.ShapeDtypeStruct((num_graphs, n_proto), jnp.float32)),
        in_specs=[vmem_spec] * len(inputs),
        out_specs=(vmem_spec, vmem_spec),
        compiler_params=pltpu.CompilerParams(vmem_limit_bytes=32 * 1024 * 1024),
        cost_estimate=pl.CostEstimate(flops=flops,
                                      transcendentals=num_layers * hidden,
                                      bytes_accessed=bytes_accessed),
    )(*inputs)
    return y, proto


if __name__ == "__main__":
    # small config consistent with the module
    dataset_num_features = 4
    hidden_dim = 32
    num_gc_layers = 3
    nmb_prototypes = 10
    num_nodes = 8
    num_graphs = 2

    key = jax.random.PRNGKey(0)
    key, kx = jax.random.split(key)
    params = make_params(key, dataset_num_features, hidden_dim, num_gc_layers,
                         nmb_prototypes)

    x = jax.random.normal(kx, (num_nodes, dataset_num_features), jnp.float32)
    # two 4-node directed rings (both directions), one per graph
    src = jnp.array([0, 1, 2, 3, 1, 2, 3, 0, 4, 5, 6, 7, 5, 6, 7, 4], jnp.int32)
    dst = jnp.array([1, 2, 3, 0, 0, 1, 2, 3, 5, 6, 7, 4, 4, 5, 6, 7], jnp.int32)
    edge_index = jnp.stack([src, dst], axis=0)
    batch = jnp.array([0, 0, 0, 0, 1, 1, 1, 1], jnp.int32)

    y, proto = simclr_forward(params, x, edge_index, batch, num_graphs)
    jax.block_until_ready((y, proto))

    assert y.shape == (num_graphs, hidden_dim * num_gc_layers)
    assert proto.shape == (num_graphs, nmb_prototypes)
    assert jnp.all(jnp.isfinite(y)) and jnp.all(jnp.isfinite(proto))
    print("KERNEL_OK")
</pallas_src>

<mosaic_0001>
module attributes {stable_mosaic.version = 11 : i64} {
  func.func @kernel(%arg0: memref<1x8xi32, #tpu.memory_space<vmem>>, %arg1: memref<8x8xbf16, #tpu.memory_space<vmem>>, %arg2: memref<8x4xf32, #tpu.memory_space<vmem>>, %arg3: memref<4x32xf32, #tpu.memory_space<vmem>>, %arg4: memref<1x32xf32, #tpu.memory_space<vmem>>, %arg5: memref<32x32xf32, #tpu.memory_space<vmem>>, %arg6: memref<1x32xf32, #tpu.memory_space<vmem>>, %arg7: memref<32x32xf32, #tpu.memory_space<vmem>>, %arg8: memref<1x32xf32, #tpu.memory_space<vmem>>, %arg9: memref<32x32xf32, #tpu.memory_space<vmem>>, %arg10: memref<1x32xf32, #tpu.memory_space<vmem>>, %arg11: memref<32x32xf32, #tpu.memory_space<vmem>>, %arg12: memref<1x32xf32, #tpu.memory_space<vmem>>, %arg13: memref<32x32xf32, #tpu.memory_space<vmem>>, %arg14: memref<1x32xf32, #tpu.memory_space<vmem>>, %arg15: memref<96x10xf32, #tpu.memory_space<vmem>>, %arg16: memref<2x96xf32, #tpu.memory_space<vmem>>, %arg17: memref<2x10xf32, #tpu.memory_space<vmem>>) attributes {dimension_semantics = [], scalar_prefetch = 0 : i64, scratch_operands = 0 : i64, tpu.core_type = #tpu.core_type<tc>} {
    %c0 = arith.constant 0 : index
    %c0_0 = arith.constant 0 : index
    %0 = vector.load %arg1[%c0, %c0_0] : memref<8x8xbf16, #tpu.memory_space<vmem>>, vector<8x8xbf16>
    %1 = tpu.iota {dimensions = array<i32: 0>} : vector<2x8xi32>
    %c0_1 = arith.constant 0 : index
    %c0_2 = arith.constant 0 : index
    %2 = vector.load %arg0[%c0_1, %c0_2] : memref<1x8xi32, #tpu.memory_space<vmem>>, vector<1x8xi32>
    %3 = vector.broadcast %2 : vector<1x8xi32> to vector<2x8xi32>
    %4 = arith.cmpi eq, %3, %1 : vector<2x8xi32>
    %cst = arith.constant 1.000000e+00 : f32
    %cst_3 = arith.constant 0.000000e+00 : f32
    %5 = vector.broadcast %cst : f32 to vector<2x8xf32>
    %6 = vector.broadcast %cst_3 : f32 to vector<2x8xf32>
    %7 = arith.select %4, %5, %6 : vector<2x8xi1>, vector<2x8xf32>
    %8 = arith.truncf %7 : vector<2x8xf32> to vector<2x8xbf16>
    %c0_4 = arith.constant 0 : index
    %c0_5 = arith.constant 0 : index
    %9 = vector.load %arg2[%c0_4, %c0_5] : memref<8x4xf32, #tpu.memory_space<vmem>>, vector<8x4xf32>
    %c0_6 = arith.constant 0 : index
    %c0_7 = arith.constant 0 : index
    %10 = vector.load %arg3[%c0_6, %c0_7] : memref<4x32xf32, #tpu.memory_space<vmem>>, vector<4x32xf32>
    %c0_8 = arith.constant 0 : index
    %c0_9 = arith.constant 0 : index
    %11 = vector.load %arg4[%c0_8, %c0_9] : memref<1x32xf32, #tpu.memory_space<vmem>>, vector<1x32xf32>
    %c0_10 = arith.constant 0 : index
    %c0_11 = arith.constant 0 : index
    %12 = vector.load %arg5[%c0_10, %c0_11] : memref<32x32xf32, #tpu.memory_space<vmem>>, vector<32x32xf32>
    %c0_12 = arith.constant 0 : index
    %c0_13 = arith.constant 0 : index
    %13 = vector.load %arg6[%c0_12, %c0_13] : memref<1x32xf32, #tpu.memory_space<vmem>>, vector<1x32xf32>
    %14 = arith.truncf %9 : vector<8x4xf32> to vector<8x4xbf16>
    %cst_14 = arith.constant dense<0.000000e+00> : vector<8x4xf32>
    %15 = tpu.matmul %0, %14, %cst_14 {dimension_numbers = #tpu.dot_dimension_numbers<[1], [0], [0], [1], [0, 0, 1, 1], [], []>} : vector<8x8xbf16>, vector<8x4xbf16>, vector<8x4xf32> -> vector<8x4xf32>
    %16 = arith.addf %9, %15 : vector<8x4xf32>
    %17 = arith.truncf %16 : vector<8x4xf32> to vector<8x4xbf16>
    %18 = arith.truncf %10 : vector<4x32xf32> to vector<4x32xbf16>
    %cst_15 = arith.constant dense<0.000000e+00> : vector<8x32xf32>
    %19 = tpu.matmul %17, %18, %cst_15 {dimension_numbers = #tpu.dot_dimension_numbers<[1], [0], [0], [1], [0, 0, 1, 1], [], []>} : vector<8x4xbf16>, vector<4x32xbf16>, vector<8x32xf32> -> vector<8x32xf32>
    %20 = vector.broadcast %11 : vector<1x32xf32> to vector<8x32xf32>
    %21 = arith.addf %19, %20 : vector<8x32xf32>
    %cst_16 = arith.constant 0.000000e+00 : f32
    %22 = vector.broadcast %cst_16 : f32 to vector<8x32xf32>
    %23 = arith.maximumf %21, %22 : vector<8x32xf32>
    %24 = arith.truncf %23 : vector<8x32xf32> to vector<8x32xbf16>
    %25 = arith.truncf %12 : vector<32x32xf32> to vector<32x32xbf16>
    %cst_17 = arith.constant dense<0.000000e+00> : vector<8x32xf32>
    %26 = tpu.matmul %24, %25, %cst_17 {dimension_numbers = #tpu.dot_dimension_numbers<[1], [0], [0], [1], [0, 0, 1, 1], [], []>} : vector<8x32xbf16>, vector<32x32xbf16>, vector<8x32xf32> -> vector<8x32xf32>
    %27 = vector.broadcast %13 : vector<1x32xf32> to vector<8x32xf32>
    %28 = arith.addf %26, %27 : vector<8x32xf32>
    %cst_18 = arith.constant 0.000000e+00 : f32
    %29 = vector.broadcast %cst_18 : f32 to vector<8x32xf32>
    %30 = arith.maximumf %28, %29 : vector<8x32xf32>
    %cst_19 = arith.constant dense<0.000000e+00> : vector<32xf32>
    %31 = vector.multi_reduction <add>, %30, %cst_19 [0] : vector<8x32xf32> to vector<32xf32>
    %32 = vector.shape_cast %31 : vector<32xf32> to vector<1x32xf32>
    %cst_20 = arith.constant 8.000000e+00 : f32
    %33 = vector.broadcast %cst_20 : f32 to vector<1x32xf32>
    %34 = arith.divf %32, %33 : vector<1x32xf32>
    %35 = vector.broadcast %34 : vector<1x32xf32> to vector<8x32xf32>
    %36 = arith.subf %30, %35 : vector<8x32xf32>
    %37 = arith.mulf %36, %36 : vector<8x32xf32>
    %cst_21 = arith.constant dense<0.000000e+00> : vector<32xf32>
    %38 = vector.multi_reduction <add>, %37, %cst_21 [0] : vector<8x32xf32> to vector<32xf32>
    %39 = vector.shape_cast %38 : vector<32xf32> to vector<1x32xf32>
    %cst_22 = arith.constant 8.000000e+00 : f32
    %40 = vector.broadcast %cst_22 : f32 to vector<1x32xf32>
    %41 = arith.divf %39, %40 : vector<1x32xf32>
    %42 = vector.broadcast %34 : vector<1x32xf32> to vector<8x32xf32>
    %43 = arith.subf %30, %42 : vector<8x32xf32>
    %cst_23 = arith.constant 9.99999974E-6 : f32
    %44 = vector.broadcast %cst_23 : f32 to vector<1x32xf32>
    %45 = arith.addf %41, %44 : vector<1x32xf32>
    %46 = math.rsqrt %45 : vector<1x32xf32>
    %47 = vector.broadcast %46 : vector<1x32xf32> to vector<8x32xf32>
    %48 = arith.mulf %43, %47 : vector<8x32xf32>
    %49 = arith.truncf %48 : vector<8x32xf32> to vector<8x32xbf16>
    %cst_24 = arith.constant dense<0.000000e+00> : vector<2x32xf32>
    %50 = tpu.matmul %8, %49, %cst_24 {dimension_numbers = #tpu.dot_dimension_numbers<[1], [0], [0], [1], [0, 0, 1, 1], [], []>} : vector<2x8xbf16>, vector<8x32xbf16>, vector<2x32xf32> -> vector<2x32xf32>
    %c0_25 = arith.constant 0 : index
    %c0_26 = arith.constant 0 : index
    %51 = vector.load %arg16[%c0_25, %c0_26] : memref<2x96xf32, #tpu.memory_space<vmem>>, vector<2x32xf32>
    tpu.vector_store %arg16[%c0_25, %c0_26], %50 {strides = array<i32>} : memref<2x96xf32, #tpu.memory_space<vmem>>, vector<2x32xf32>,
    %c0_27 = arith.constant 0 : index
    %c0_28 = arith.constant 0 : index
    %52 = vector.load %arg7[%c0_27, %c0_28] : memref<32x32xf32, #tpu.memory_space<vmem>>, vector<32x32xf32>
    %c0_29 = arith.constant 0 : index
    %c0_30 = arith.constant 0 : index
    %53 = vector.load %arg8[%c0_29, %c0_30] : memref<1x32xf32, #tpu.memory_space<vmem>>, vector<1x32xf32>
    %c0_31 = arith.constant 0 : index
    %c0_32 = arith.constant 0 : index
    %54 = vector.load %arg9[%c0_31, %c0_32] : memref<32x32xf32, #tpu.memory_space<vmem>>, vector<32x32xf32>
    %c0_33 = arith.constant 0 : index
    %c0_34 = arith.constant 0 : index
    %55 = vector.load %arg10[%c0_33, %c0_34] : memref<1x32xf32, #tpu.memory_space<vmem>>, vector<1x32xf32>
    %56 = arith.truncf %48 : vector<8x32xf32> to vector<8x32xbf16>
    %cst_35 = arith.constant dense<0.000000e+00> : vector<8x32xf32>
    %57 = tpu.matmul %0, %56, %cst_35 {dimension_numbers = #tpu.dot_dimension_numbers<[1], [0], [0], [1], [0, 0, 1, 1], [], []>} : vector<8x8xbf16>, vector<8x32xbf16>, vector<8x32xf32> -> vector<8x32xf32>
    %58 = arith.addf %48, %57 : vector<8x32xf32>
    %59 = arith.truncf %58 : vector<8x32xf32> to vector<8x32xbf16>
    %60 = arith.truncf %52 : vector<32x32xf32> to vector<32x32xbf16>
    %cst_36 = arith.constant dense<0.000000e+00> : vector<8x32xf32>
    %61 = tpu.matmul %59, %60, %cst_36 {dimension_numbers = #tpu.dot_dimension_numbers<[1], [0], [0], [1], [0, 0, 1, 1], [], []>} : vector<8x32xbf16>, vector<32x32xbf16>, vector<8x32xf32> -> vector<8x32xf32>
    %62 = vector.broadcast %53 : vector<1x32xf32> to vector<8x32xf32>
    %63 = arith.addf %61, %62 : vector<8x32xf32>
    %cst_37 = arith.constant 0.000000e+00 : f32
    %64 = vector.broadcast %cst_37 : f32 to vector<8x32xf32>
    %65 = arith.maximumf %63, %64 : vector<8x32xf32>
    %66 = arith.truncf %65 : vector<8x32xf32> to vector<8x32xbf16>
    %67 = arith.truncf %54 : vector<32x32xf32> to vector<32x32xbf16>
    %cst_38 = arith.constant dense<0.000000e+00> : vector<8x32xf32>
    %68 = tpu.matmul %66, %67, %cst_38 {dimension_numbers = #tpu.dot_dimension_numbers<[1], [0], [0], [1], [0, 0, 1, 1], [], []>} : vector<8x32xbf16>, vector<32x32xbf16>, vector<8x32xf32> -> vector<8x32xf32>
    %69 = vector.broadcast %55 : vector<1x32xf32> to vector<8x32xf32>
    %70 = arith.addf %68, %69 : vector<8x32xf32>
    %cst_39 = arith.constant 0.000000e+00 : f32
    %71 = vector.broadcast %cst_39 : f32 to vector<8x32xf32>
    %72 = arith.maximumf %70, %71 : vector<8x32xf32>
    %cst_40 = arith.constant dense<0.000000e+00> : vector<32xf32>
    %73 = vector.multi_reduction <add>, %72, %cst_40 [0] : vector<8x32xf32> to vector<32xf32>
    %74 = vector.shape_cast %73 : vector<32xf32> to vector<1x32xf32>
    %cst_41 = arith.constant 8.000000e+00 : f32
    %75 = vector.broadcast %cst_41 : f32 to vector<1x32xf32>
    %76 = arith.divf %74, %75 : vector<1x32xf32>
    %77 = vector.broadcast %76 : vector<1x32xf32> to vector<8x32xf32>
    %78 = arith.subf %72, %77 : vector<8x32xf32>
    %79 = arith.mulf %78, %78 : vector<8x32xf32>
    %cst_42 = arith.constant dense<0.000000e+00> : vector<32xf32>
    %80 = vector.multi_reduction <add>, %79, %cst_42 [0] : vector<8x32xf32> to vector<32xf32>
    %81 = vector.shape_cast %80 : vector<32xf32> to vector<1x32xf32>
    %cst_43 = arith.constant 8.000000e+00 : f32
    %82 = vector.broadcast %cst_43 : f32 to vector<1x32xf32>
    %83 = arith.divf %81, %82 : vector<1x32xf32>
    %84 = vector.broadcast %76 : vector<1x32xf32> to vector<8x32xf32>
    %85 = arith.subf %72, %84 : vector<8x32xf32>
    %cst_44 = arith.constant 9.99999974E-6 : f32
    %86 = vector.broadcast %cst_44 : f32 to vector<1x32xf32>
    %87 = arith.addf %83, %86 : vector<1x32xf32>
    %88 = math.rsqrt %87 : vector<1x32xf32>
    %89 = vector.broadcast %88 : vector<1x32xf32> to vector<8x32xf32>
    %90 = arith.mulf %85, %89 : vector<8x32xf32>
    %91 = arith.truncf %90 : vector<8x32xf32> to vector<8x32xbf16>
    %cst_45 = arith.constant dense<0.000000e+00> : vector<2x32xf32>
    %92 = tpu.matmul %8, %91, %cst_45 {dimension_numbers = #tpu.dot_dimension_numbers<[1], [0], [0], [1], [0, 0, 1, 1], [], []>} : vector<2x8xbf16>, vector<8x32xbf16>, vector<2x32xf32> -> vector<2x32xf32>
    %c0_46 = arith.constant 0 : index
    %c32 = arith.constant 32 : index
    %93 = vector.load %arg16[%c0_46, %c32] : memref<2x96xf32, #tpu.memory_space<vmem>>, vector<2x32xf32>
    tpu.vector_store %arg16[%c0_46, %c32], %92 {strides = array<i32>} : memref<2x96xf32, #tpu.memory_space<vmem>>, vector<2x32xf32>,
    %c0_47 = arith.constant 0 : index
    %c0_48 = arith.constant 0 : index
    %94 = vector.load %arg11[%c0_47, %c0_48] : memref<32x32xf32, #tpu.memory_space<vmem>>, vector<32x32xf32>
    %c0_49 = arith.constant 0 : index
    %c0_50 = arith.constant 0 : index
    %95 = vector.load %arg12[%c0_49, %c0_50] : memref<1x32xf32, #tpu.memory_space<vmem>>, vector<1x32xf32>
    %c0_51 = arith.constant 0 : index
    %c0_52 = arith.constant 0 : index
    %96 = vector.load %arg13[%c0_51, %c0_52] : memref<32x32xf32, #tpu.memory_space<vmem>>, vector<32x32xf32>
    %c0_53 = arith.constant 0 : index
    %c0_54 = arith.constant 0 : index
    %97 = vector.load %arg14[%c0_53, %c0_54] : memref<1x32xf32, #tpu.memory_space<vmem>>, vector<1x32xf32>
    %98 = arith.truncf %90 : vector<8x32xf32> to vector<8x32xbf16>
    %cst_55 = arith.constant dense<0.000000e+00> : vector<8x32xf32>
    %99 = tpu.matmul %0, %98, %cst_55 {dimension_numbers = #tpu.dot_dimension_numbers<[1], [0], [0], [1], [0, 0, 1, 1], [], []>} : vector<8x8xbf16>, vector<8x32xbf16>, vector<8x32xf32> -> vector<8x32xf32>
    %100 = arith.addf %90, %99 : vector<8x32xf32>
    %101 = arith.truncf %100 : vector<8x32xf32> to vector<8x32xbf16>
    %102 = arith.truncf %94 : vector<32x32xf32> to vector<32x32xbf16>
    %cst_56 = arith.constant dense<0.000000e+00> : vector<8x32xf32>
    %103 = tpu.matmul %101, %102, %cst_56 {dimension_numbers = #tpu.dot_dimension_numbers<[1], [0], [0], [1], [0, 0, 1, 1], [], []>} : vector<8x32xbf16>, vector<32x32xbf16>, vector<8x32xf32> -> vector<8x32xf32>
    %104 = vector.broadcast %95 : vector<1x32xf32> to vector<8x32xf32>
    %105 = arith.addf %103, %104 : vector<8x32xf32>
    %cst_57 = arith.constant 0.000000e+00 : f32
    %106 = vector.broadcast %cst_57 : f32 to vector<8x32xf32>
    %107 = arith.maximumf %105, %106 : vector<8x32xf32>
    %108 = arith.truncf %107 : vector<8x32xf32> to vector<8x32xbf16>
    %109 = arith.truncf %96 : vector<32x32xf32> to vector<32x32xbf16>
    %cst_58 = arith.constant dense<0.000000e+00> : vector<8x32xf32>
    %110 = tpu.matmul %108, %109, %cst_58 {dimension_numbers = #tpu.dot_dimension_numbers<[1], [0], [0], [1], [0, 0, 1, 1], [], []>} : vector<8x32xbf16>, vector<32x32xbf16>, vector<8x32xf32> -> vector<8x32xf32>
    %111 = vector.broadcast %97 : vector<1x32xf32> to vector<8x32xf32>
    %112 = arith.addf %110, %111 : vector<8x32xf32>
    %cst_59 = arith.constant 0.000000e+00 : f32
    %113 = vector.broadcast %cst_59 : f32 to vector<8x32xf32>
    %114 = arith.maximumf %112, %113 : vector<8x32xf32>
    %cst_60 = arith.constant dense<0.000000e+00> : vector<32xf32>
    %115 = vector.multi_reduction <add>, %114, %cst_60 [0] : vector<8x32xf32> to vector<32xf32>
    %116 = vector.shape_cast %115 : vector<32xf32> to vector<1x32xf32>
    %cst_61 = arith.constant 8.000000e+00 : f32
    %117 = vector.broadcast %cst_61 : f32 to vector<1x32xf32>
    %118 = arith.divf %116, %117 : vector<1x32xf32>
    %119 = vector.broadcast %118 : vector<1x32xf32> to vector<8x32xf32>
    %120 = arith.subf %114, %119 : vector<8x32xf32>
    %121 = arith.mulf %120, %120 : vector<8x32xf32>
    %cst_62 = arith.constant dense<0.000000e+00> : vector<32xf32>
    %122 = vector.multi_reduction <add>, %121, %cst_62 [0] : vector<8x32xf32> to vector<32xf32>
    %123 = vector.shape_cast %122 : vector<32xf32> to vector<1x32xf32>
    %cst_63 = arith.constant 8.000000e+00 : f32
    %124 = vector.broadcast %cst_63 : f32 to vector<1x32xf32>
    %125 = arith.divf %123, %124 : vector<1x32xf32>
    %126 = vector.broadcast %118 : vector<1x32xf32> to vector<8x32xf32>
    %127 = arith.subf %114, %126 : vector<8x32xf32>
    %cst_64 = arith.constant 9.99999974E-6 : f32
    %128 = vector.broadcast %cst_64 : f32 to vector<1x32xf32>
    %129 = arith.addf %125, %128 : vector<1x32xf32>
    %130 = math.rsqrt %129 : vector<1x32xf32>
    %131 = vector.broadcast %130 : vector<1x32xf32> to vector<8x32xf32>
    %132 = arith.mulf %127, %131 : vector<8x32xf32>
    %133 = arith.truncf %132 : vector<8x32xf32> to vector<8x32xbf16>
    %cst_65 = arith.constant dense<0.000000e+00> : vector<2x32xf32>
    %134 = tpu.matmul %8, %133, %cst_65 {dimension_numbers = #tpu.dot_dimension_numbers<[1], [0], [0], [1], [0, 0, 1, 1], [], []>} : vector<2x8xbf16>, vector<8x32xbf16>, vector<2x32xf32> -> vector<2x32xf32>
    %c0_66 = arith.constant 0 : index
    %c64 = arith.constant 64 : index
    %135 = vector.load %arg16[%c0_66, %c64] : memref<2x96xf32, #tpu.memory_space<vmem>>, vector<2x32xf32>
    tpu.vector_store %arg16[%c0_66, %c64], %134 {strides = array<i32>} : memref<2x96xf32, #tpu.memory_space<vmem>>, vector<2x32xf32>,
    %c0_67 = arith.constant 0 : index
    %c0_68 = arith.constant 0 : index
    %136 = vector.load %arg16[%c0_67, %c0_68] : memref<2x96xf32, #tpu.memory_space<vmem>>, vector<2x96xf32>
    %c0_69 = arith.constant 0 : index
    %c0_70 = arith.constant 0 : index
    %137 = vector.load %arg15[%c0_69, %c0_70] : memref<96x10xf32, #tpu.memory_space<vmem>>, vector<96x10xf32>
    %138 = arith.truncf %136 : vector<2x96xf32> to vector<2x96xbf16>
    %139 = arith.truncf %137 : vector<96x10xf32> to vector<96x10xbf16>
    %cst_71 = arith.constant dense<0.000000e+00> : vector<2x10xf32>
    %140 = tpu.matmul %138, %139, %cst_71 {dimension_numbers = #tpu.dot_dimension_numbers<[1], [0], [0], [1], [0, 0, 1, 1], [], []>} : vector<2x96xbf16>, vector<96x10xbf16>, vector<2x10xf32> -> vector<2x10xf32>
    %c0_72 = arith.constant 0 : index
    %c0_73 = arith.constant 0 : index
    %141 = vector.load %arg17[%c0_72, %c0_73] : memref<2x10xf32, #tpu.memory_space<vmem>>, vector<2x10xf32>
    tpu.vector_store %arg17[%c0_72, %c0_73], %140 {strides = array<i32>} : memref<2x10xf32, #tpu.memory_space<vmem>>, vector<2x10xf32>,
    return
  }
}

</mosaic_0001>

<llo_original>
// kernel: tpu_custom_call.1
$region0: #{tpu_custom_call.1}
  #allocation0 [shape = 'u32[]', space=smem, size = 0x4, offset = 0x4, fixed_abs, tag = 'smem constant byte address 0x4 - core index']
  #allocation1 [shape = 'u32[144,128]{1,0:T(1,128)}', space=vmem, size = 0x12000, scoped, tag = 'internal scratch']
  %s0 = inlined_call_operand.hbm [shape: s32[1,8], index: 0, kind: input, shape index: {}]
  %s1 = inlined_call_operand.hbm [shape: bf16[8,8], index: 1, kind: input, shape index: {}]
  %s2 = inlined_call_operand.vmem [shape: f32[8,4], index: 2, kind: input, shape index: {}]
  %s3 = inlined_call_operand.hbm [shape: f32[4,32], index: 3, kind: input, shape index: {}]
  %s4 = inlined_call_operand.hbm [shape: f32[1,32], index: 4, kind: input, shape index: {}]
  %s5 = inlined_call_operand.vmem [shape: f32[32,32], index: 5, kind: input, shape index: {}]
  %s6 = inlined_call_operand.hbm [shape: f32[1,32], index: 6, kind: input, shape index: {}]
  %s7 = inlined_call_operand.vmem [shape: f32[32,32], index: 7, kind: input, shape index: {}]
  %s8 = inlined_call_operand.hbm [shape: f32[1,32], index: 8, kind: input, shape index: {}]
  %s9 = inlined_call_operand.vmem [shape: f32[32,32], index: 9, kind: input, shape index: {}]
  %s10 = inlined_call_operand.hbm [shape: f32[1,32], index: 10, kind: input, shape index: {}]
  %s11 = inlined_call_operand.vmem [shape: f32[32,32], index: 11, kind: input, shape index: {}]
  %s12 = inlined_call_operand.hbm [shape: f32[1,32], index: 12, kind: input, shape index: {}]
  %s13 = inlined_call_operand.vmem [shape: f32[32,32], index: 13, kind: input, shape index: {}]
  %s14 = inlined_call_operand.hbm [shape: f32[1,32], index: 14, kind: input, shape index: {}]
  %s15 = inlined_call_operand.vmem [shape: f32[96,10], index: 15, kind: input, shape index: {}]
  %s16 = inlined_call_operand.hbm [shape: f32[2,96], index: 16, kind: output, shape index: {0}]
  %s17 = inlined_call_operand.hbm [shape: f32[2,10], index: 17, kind: output, shape index: {1}]
  %18 = xla_tuple %s16, %s17
  %s19 = sld [smem:[#allocation0]]
  $region118: #{tpu_custom_call.1} parent=0
    _
  %s21 = ssub.s32 1, %s19
  %s22 = scalar_select 0, %s21, %s19
  $region1: #{tpu_custom_call.1} parent=0
    #allocation2 [shape = 'u8[512]{0}', space=vmem, size = 0x400, scoped, tag = 'input window, operand 0, single buffered']
    #allocation3 [shape = 's32[1]{0}', space=sflag, size = 0x4, scoped, tag = 'scoped memory for tpu_custom_call.1']
    #allocation4 [shape = 's32[1]{0}', space=sflag, size = 0x4, scoped, tag = 'scoped memory for tpu_custom_call.1']
    #allocation5 [shape = 'u8[2048]{0}', space=vmem, size = 0x800, scoped, tag = 'input window, operand 1, single buffered']
    #allocation6 [shape = 's32[1]{0}', space=sflag, size = 0x4, scoped, tag = 'scoped memory for tpu_custom_call.1']
    #allocation7 [shape = 'u8[2048]{0}', space=vmem, size = 0x800, scoped, tag = 'input window, operand 3, single buffered']
    #allocation8 [shape = 'u8[512]{0}', space=vmem, size = 0x400, scoped, tag = 'input window, operand 4, single buffered']
    #allocation9 [shape = 's32[1]{0}', space=sflag, size = 0x4, scoped, tag = 'scoped memory for tpu_custom_call.1']
    #allocation10 [shape = 'u8[512]{0}', space=vmem, size = 0x400, scoped, tag = 'input window, operand 6, single buffered']
    #allocation11 [shape = 'u8[512]{0}', space=vmem, size = 0x400, scoped, tag = 'input window, operand 8, single buffered']
    #allocation12 [shape = 's32[1]{0}', space=sflag, size = 0x4, scoped, tag = 'scoped memory for tpu_custom_call.1']
    #allocation13 [shape = 'u8[512]{0}', space=vmem, size = 0x400, scoped, tag = 'input window, operand 10, single buffered']
    #allocation14 [shape = 'u8[512]{0}', space=vmem, size = 0x400, scoped, tag = 'input window, operand 12, single buffered']
    #allocation15 [shape = 's32[1]{0}', space=sflag, size = 0x4, scoped, tag = 'scoped memory for tpu_custom_call.1']
    #allocation16 [shape = 'u8[512]{0}', space=vmem, size = 0x400, scoped, tag = 'input window, operand 14, single buffered']
    #allocation17 [shape = 'u8[1024]{0}', space=vmem, size = 0x400, scoped, tag = 'output window, operand 0, single buffered']
    #allocation18 [shape = 'u8[1024]{0}', space=vmem, size = 0x400, scoped, tag = 'output window, operand 1, single buffered']
    #allocation19 [shape = 's32[1]{0}', space=sflag, size = 0x4, scoped, tag = 'scoped memory for tpu_custom_call.1']
    %23 = vsyncpa [#allocation3], 0
    %24 = vsyncpa [#allocation6], 0
    %25 = vsyncpa [#allocation9], 0
    %26 = vsyncpa [#allocation12], 0
    %27 = vsyncpa [#allocation15], 0
    %28 = vsyncpa [#allocation4], 0
    %29 = vsyncpa [#allocation19], 0
    // Predicated region
    $region2: #{tpu_custom_call.1} parent=1 // pred_check
      _
    $region3: #{tpu_custom_call.1} parent=1 // pred_check_branch
      %31 = sbr.rel (0) target = $region5
    $region4: #{tpu_custom_call.1} parent=1 // pred_region
      %s33 = ssub.s32 16, 16
      %34 = vsyncadd [#allocation3], %s33
      %s36 = sshll.u32 [#allocation2], 4
      %s37 = int_to_ptr.vmem [resolvable:$true] %s36
      %39 = dma.hbm_to_vmem [thread:$0]  %s0, 16, %s37, [#allocation3]
    $region5: #{tpu_custom_call.1} parent=1 // pred_fallthru
      _
    // Predicated region
    $region6: #{tpu_custom_call.1} parent=1 // pred_check
      _
    $region7: #{tpu_custom_call.1} parent=1 // pred_check_branch
      %41 = sbr.rel (0) target = $region9
    $region8: #{tpu_custom_call.1} parent=1 // pred_region
      %s43 = ssub.s32 64, 64
      %44 = vsyncadd [#allocation6], %s43
      %s46 = sshll.u32 [#allocation5], 4
      %s47 = int_to_ptr.vmem [resolvable:$true] %s46
      %49 = dma.hbm_to_vmem [thread:$0]  %s1, 64, %s47, [#allocation6]
    $region9: #{tpu_custom_call.1} parent=1 // pred_fallthru
      _
    // Predicated region
    $region10: #{tpu_custom_call.1} parent=1 // pred_check
      _
    $region11: #{tpu_custom_call.1} parent=1 // pred_check_branch
      %51 = sbr.rel (0) target = $region13
    $region12: #{tpu_custom_call.1} parent=1 // pred_region
      _
    $region13: #{tpu_custom_call.1} parent=1 // pred_fallthru
      _
    // Predicated region
    $region14: #{tpu_custom_call.1} parent=1 // pred_check
      _
    $region15: #{tpu_custom_call.1} parent=1 // pred_check_branch
      %53 = sbr.rel (0) target = $region17
    $region16: #{tpu_custom_call.1} parent=1 // pred_region
      %s55 = ssub.s32 64, 64
      %56 = vsyncadd [#allocation6], %s55
      %s58 = sshll.u32 [#allocation7], 4
      %s59 = int_to_ptr.vmem [resolvable:$true] %s58
      %61 = dma.hbm_to_vmem [thread:$0]  %s3, 64, %s59, [#allocation6]
    $region17: #{tpu_custom_call.1} parent=1 // pred_fallthru
      _
    // Predicated region
    $region18: #{tpu_custom_call.1} parent=1 // pred_check
      _
    $region19: #{tpu_custom_call.1} parent=1 // pred_check_branch
      %63 = sbr.rel (0) target = $region21
    $region20: #{tpu_custom_call.1} parent=1 // pred_region
      %s65 = ssub.s32 16, 16
      %66 = vsyncadd [#allocation9], %s65
      %s68 = sshll.u32 [#allocation8], 4
      %s69 = int_to_ptr.vmem [resolvable:$true] %s68
      %71 = dma.hbm_to_vmem [thread:$0]  %s4, 16, %s69, [#allocation9]
    $region21: #{tpu_custom_call.1} parent=1 // pred_fallthru
      _
    // Predicated region
    $region22: #{tpu_custom_call.1} parent=1 // pred_check
      _
    $region23: #{tpu_custom_call.1} parent=1 // pred_check_branch
      %73 = sbr.rel (0) target = $region25
    $region24: #{tpu_custom_call.1} parent=1 // pred_region
      _
    $region25: #{tpu_custom_call.1} parent=1 // pred_fallthru
      _
    // Predicated region
    $region26: #{tpu_custom_call.1} parent=1 // pred_check
      _
    $region27: #{tpu_custom_call.1} parent=1 // pred_check_branch
      %75 = sbr.rel (0) target = $region29
    $region28: #{tpu_custom_call.1} parent=1 // pred_region
      %s77 = ssub.s32 16, 16
      %78 = vsyncadd [#allocation9], %s77
      %s80 = sshll.u32 [#allocation10], 4
      %s81 = int_to_ptr.vmem [resolvable:$true] %s80
      %83 = dma.hbm_to_vmem [thread:$0]  %s6, 16, %s81, [#allocation9]
    $region29: #{tpu_custom_call.1} parent=1 // pred_fallthru
      _
    // Predicated region
    $region30: #{tpu_custom_call.1} parent=1 // pred_check
      _
    $region31: #{tpu_custom_call.1} parent=1 // pred_check_branch
      %85 = sbr.rel (0) target = $region33
    $region32: #{tpu_custom_call.1} parent=1 // pred_region
      _
    $region33: #{tpu_custom_call.1} parent=1 // pred_fallthru
      _
    // Predicated region
    $region34: #{tpu_custom_call.1} parent=1 // pred_check
      _
    $region35: #{tpu_custom_call.1} parent=1 // pred_check_branch
      %87 = sbr.rel (0) target = $region37
    $region36: #{tpu_custom_call.1} parent=1 // pred_region
      %s89 = ssub.s32 16, 16
      %90 = vsyncadd [#allocation12], %s89
      %s92 = sshll.u32 [#allocation11], 4
      %s93 = int_to_ptr.vmem [resolvable:$true] %s92
      %95 = dma.hbm_to_vmem [thread:$0]  %s8, 16, %s93, [#allocation12]
    $region37: #{tpu_custom_call.1} parent=1 // pred_fallthru
      _
    // Predicated region
    $region38: #{tpu_custom_call.1} parent=1 // pred_check
      _
    $region39: #{tpu_custom_call.1} parent=1 // pred_check_branch
      %97 = sbr.rel (0) target = $region41
    $region40: #{tpu_custom_call.1} parent=1 // pred_region
      _
    $region41: #{tpu_custom_call.1} parent=1 // pred_fallthru
      _
    // Predicated region
    $region42: #{tpu_custom_call.1} parent=1 // pred_check
      _
    $region43: #{tpu_custom_call.1} parent=1 // pred_check_branch
      %99 = sbr.rel (0) target = $region45
    $region44: #{tpu_custom_call.1} parent=1 // pred_region
      %s101 = ssub.s32 16, 16
      %102 = vsyncadd [#allocation12], %s101
      %s104 = sshll.u32 [#allocation13], 4
      %s105 = int_to_ptr.vmem [resolvable:$true] %s104
      %107 = dma.hbm_to_vmem [thread:$0]  %s10, 16, %s105, [#allocation12]
    $region45: #{tpu_custom_call.1} parent=1 // pred_fallthru
      _
    // Predicated region
    $region46: #{tpu_custom_call.1} parent=1 // pred_check
      _
    $region47: #{tpu_custom_call.1} parent=1 // pred_check_branch
      %109 = sbr.rel (0) target = $region49
    $region48: #{tpu_custom_call.1} parent=1 // pred_region
      _
    $region49: #{tpu_custom_call.1} parent=1 // pred_fallthru
      _
    // Predicated region
    $region50: #{tpu_custom_call.1} parent=1 // pred_check
      _
    $region51: #{tpu_custom_call.1} parent=1 // pred_check_branch
      %111 = sbr.rel (0) target = $region53
    $region52: #{tpu_custom_call.1} parent=1 // pred_region
      %s113 = ssub.s32 16, 16
      %114 = vsyncadd [#allocation15], %s113
      %s116 = sshll.u32 [#allocation14], 4
      %s117 = int_to_ptr.vmem [resolvable:$true] %s116
      %119 = dma.hbm_to_vmem [thread:$0]  %s12, 16, %s117, [#allocation15]
    $region53: #{tpu_custom_call.1} parent=1 // pred_fallthru
      _
    // Predicated region
    $region54: #{tpu_custom_call.1} parent=1 // pred_check
      _
    $region55: #{tpu_custom_call.1} parent=1 // pred_check_branch
      %121 = sbr.rel (0) target = $region57
    $region56: #{tpu_custom_call.1} parent=1 // pred_region
      _
    $region57: #{tpu_custom_call.1} parent=1 // pred_fallthru
      _
    // Predicated region
    $region58: #{tpu_custom_call.1} parent=1 // pred_check
      _
    $region59: #{tpu_custom_call.1} parent=1 // pred_check_branch
      %123 = sbr.rel (0) target = $region61
    $region60: #{tpu_custom_call.1} parent=1 // pred_region
      %s125 = ssub.s32 16, 16
      %126 = vsyncadd [#allocation15], %s125
      %s128 = sshll.u32 [#allocation16], 4
      %s129 = int_to_ptr.vmem [resolvable:$true] %s128
      %131 = dma.hbm_to_vmem [thread:$0]  %s14, 16, %s129, [#allocation15]
    $region61: #{tpu_custom_call.1} parent=1 // pred_fallthru
      _
    // Predicated region
    $region62: #{tpu_custom_call.1} parent=1 // pred_check
      _
    $region63: #{tpu_custom_call.1} parent=1 // pred_check_branch
      %133 = sbr.rel (0) target = $region65
    $region64: #{tpu_custom_call.1} parent=1 // pred_region
      _
    $region65: #{tpu_custom_call.1} parent=1 // pred_fallthru
      _
    // Predicated region
    $region66: #{tpu_custom_call.1} parent=1 // pred_check
      _
    $region67: #{tpu_custom_call.1} parent=1 // pred_check_branch
      %135 = sbr.rel (0) target = $region69
    $region68: #{tpu_custom_call.1} parent=1 // pred_region
      %136 = dma.done [#allocation3], 16
    $region69: #{tpu_custom_call.1} parent=1 // pred_fallthru
      _
    // Predicated region
    $region70: #{tpu_custom_call.1} parent=1 // pred_check
      _
    $region71: #{tpu_custom_call.1} parent=1 // pred_check_branch
      %138 = sbr.rel (0) target = $region73
    $region72: #{tpu_custom_call.1} parent=1 // pred_region
      %139 = dma.done [#allocation6], 64
    $region73: #{tpu_custom_call.1} parent=1 // pred_fallthru
      _
    // Predicated region
    $region74: #{tpu_custom_call.1} parent=1 // pred_check
      _
    $region75: #{tpu_custom_call.1} parent=1 // pred_check_branch
      %141 = sbr.rel (0) target = $region77
    $region76: #{tpu_custom_call.1} parent=1 // pred_region
      %142 = dma.done [#allocation6], 64
    $region77: #{tpu_custom_call.1} parent=1 // pred_fallthru
      _
    // Predicated region
    $region78: #{tpu_custom_call.1} parent=1 // pred_check
      _
    $region79: #{tpu_custom_call.1} parent=1 // pred_check_branch
      %144 = sbr.rel (0) target = $region81
    $region80: #{tpu_custom_call.1} parent=1 // pred_region
      %145 = dma.done [#allocation9], 16
    $region81: #{tpu_custom_call.1} parent=1 // pred_fallthru
      _
    // Predicated region
    $region82: #{tpu_custom_call.1} parent=1 // pred_check
      _
    $region83: #{tpu_custom_call.1} parent=1 // pred_check_branch
      %147 = sbr.rel (0) target = $region85
    $region84: #{tpu_custom_call.1} parent=1 // pred_region
      %148 = dma.done [#allocation9], 16
    $region85: #{tpu_custom_call.1} parent=1 // pred_fallthru
      _
    // Predicated region
    $region86: #{tpu_custom_call.1} parent=1 // pred_check
      _
    $region87: #{tpu_custom_call.1} parent=1 // pred_check_branch
      %150 = sbr.rel (0) target = $region89
    $region88: #{tpu_custom_call.1} parent=1 // pred_region
      %151 = dma.done [#allocation12], 16
    $region89: #{tpu_custom_call.1} parent=1 // pred_fallthru
      _
    // Predicated region
    $region90: #{tpu_custom_call.1} parent=1 // pred_check
      _
    $region91: #{tpu_custom_call.1} parent=1 // pred_check_branch
      %153 = sbr.rel (0) target = $region93
    $region92: #{tpu_custom_call.1} parent=1 // pred_region
      %154 = dma.done [#allocation12], 16
    $region93: #{tpu_custom_call.1} parent=1 // pred_fallthru
      _
    // Predicated region
    $region94: #{tpu_custom_call.1} parent=1 // pred_check
      _
    $region95: #{tpu_custom_call.1} parent=1 // pred_check_branch
      %156 = sbr.rel (0) target = $region97
    $region96: #{tpu_custom_call.1} parent=1 // pred_region
      %157 = dma.done [#allocation15], 16
    $region97: #{tpu_custom_call.1} parent=1 // pred_fallthru
      _
    // Predicated region
    $region98: #{tpu_custom_call.1} parent=1 // pred_check
      _
    $region99: #{tpu_custom_call.1} parent=1 // pred_check_branch
      %159 = sbr.rel (0) target = $region101
    $region100: #{tpu_custom_call.1} parent=1 // pred_region
      %160 = dma.done [#allocation15], 16
    $region101: #{tpu_custom_call.1} parent=1 // pred_fallthru
      _
    %v162 = vld [vmem:[#allocation5] sm:$0xf]
    %v163 = vlaneseq
    %v164 = vshrl.u32 %v163, 7
    %v165 = vld [vmem:[#allocation2] sm:$0x1]
    %v166 = vlaneseq
    %v167 = vshrl.u32 %v166, 7
    %v168 = vsub.s32 0, %v167
    %v169 = vrot.slane %v165, %v168
    %vm170 = vcmp.eq.s32.totalorder %v169, %v164
    %v171 = vsel %vm170, 1.0, 0.0
    %v172 = vpack.c.bf16 %v171, %v171
    %v173 = vld [vmem:[%s2] sm:$0xff]
    %v174 = vld [vmem:[#allocation7] sm:$0xf]
    %v175 = vld [vmem:[#allocation8] sm:$0x1]
    %v176 = vld [vmem:[%s5] sm:$0xff]
    %v177 = vld [vmem:[%s5 + $0x8] sm:$0xff]
    %v178 = vld [vmem:[%s5 + $0x10] sm:$0xff]
    %v179 = vld [vmem:[%s5 + $0x18] sm:$0xff]
    %v180 = vld [vmem:[#allocation10] sm:$0x1]
    %v181 = vpack.c.bf16 %v173, %v173
    %vm182 = vcmask 64512
    %v184 = vsel %vm182, %v162, 0
    %vm186 = vcmask 1043456
    %v188 = vsel %vm186, %v181, 0
    %190 = vmatprep.subr.bf16.mxu0 0
    %191 = vmatpush1.bf16.msra.mxu0 %v188
    %192 = vmatprep.subr.bf16.mxu0 0
    %193 = vmatpush1.bf16.msra.mxu0 0
    %194 = vmatprep.subr.bf16.mxu0 0
    %195 = vmatpush1.bf16.msra.mxu0 0
    %196 = vmatprep.subr.bf16.mxu0 0
    %197 = vmatpush1.bf16.msra.mxu0 0
    %198 = vmatprep.subr.bf16.mxu0 0
    %199 = vmatpush1.bf16.msra.mxu0 0
    %200 = vmatprep.subr.bf16.mxu0 0
    %201 = vmatpush1.bf16.msra.mxu0 0
    %202 = vmatprep.subr.bf16.mxu0 0
    %203 = vmatpush1.bf16.msra.mxu0 0
    %204 = vmatprep.subr.bf16.mxu0 0
    %205 = vmatpush1.bf16.msra.mxu0 0
    %206 = vmatprep.subr.bf16.mxu0 0
    %207 = vmatpush1.bf16.msra.mxu0 0
    %208 = vmatprep.subr.bf16.mxu0 0
    %209 = vmatpush1.bf16.msra.mxu0 0
    %210 = vmatprep.subr.bf16.mxu0 0
    %211 = vmatpush1.bf16.msra.mxu0 0
    %212 = vmatprep.subr.bf16.mxu0 0
    %213 = vmatpush1.bf16.msra.mxu0 0
    %214 = vmatprep.subr.bf16.mxu0 0
    %215 = vmatpush1.bf16.msra.mxu0 0
    %216 = vmatprep.subr.bf16.mxu0 0
    %217 = vmatpush1.bf16.msra.mxu0 0
    %218 = vmatprep.subr.bf16.mxu0 0
    %219 = vmatpush1.bf16.msra.mxu0 0
    %220 = vmatprep.subr.bf16.mxu0 0
    %221 = vmatpush1.bf16.msra.mxu0 0
    %222 = vmatprep.mubr.bf16.mxu0 0
    %223 = vmatmul.mubr.bf16.gmra.mrb[0].mxu0 %v184
    %v224 = vpop.f32.mrb[0].mxu0
    %v225 = vadd.f32 0.0, %v224
    %v226 = vpop.f32.mrb[0].mxu0
    %v227 = vpop.f32.mrb[0].mxu0
    %v228 = vpop.f32.mrb[0].mxu0
    %229 = vdwg.mxu0
    %v230 = vadd.f32 %v173, %v225
    %v231 = vpack.c.bf16 %v230, %v230
    %v232 = vpack.c.bf16 %v174, %v174
    %v234 = vlaneseq
    %v235 = vshrl.u32 %v234, 7
    %v236 = vsub.s32 0, %v235
    %v237 = vrot.slane %v175, %v236
    %vm239 = vcmask 31744
    %v241 = vsel %vm239, %v231, 0
    %vm243 = vcmask 1041408
    %v245 = vsel %vm243, %v232, 0
    %247 = vmatprep.subr.bf16.mxu0 0
    %248 = vmatpush1.bf16.msra.mxu0 %v245
    %249 = vmatprep.subr.bf16.mxu0 0
    %250 = vmatpush1.bf16.msra.mxu0 0
    %251 = vmatprep.subr.bf16.mxu0 0
    %252 = vmatpush1.bf16.msra.mxu0 0
    %253 = vmatprep.subr.bf16.mxu0 0
    %254 = vmatpush1.bf16.msra.mxu0 0
    %255 = vmatprep.subr.bf16.mxu0 0
    %256 = vmatpush1.bf16.msra.mxu0 0
    %257 = vmatprep.subr.bf16.mxu0 0
    %258 = vmatpush1.bf16.msra.mxu0 0
    %259 = vmatprep.subr.bf16.mxu0 0
    %260 = vmatpush1.bf16.msra.mxu0 0
    %261 = vmatprep.subr.bf16.mxu0 0
    %262 = vmatpush1.bf16.msra.mxu0 0
    %263 = vmatprep.subr.bf16.mxu0 0
    %264 = vmatpush1.bf16.msra.mxu0 0
    %265 = vmatprep.subr.bf16.mxu0 0
    %266 = vmatpush1.bf16.msra.mxu0 0
    %267 = vmatprep.subr.bf16.mxu0 0
    %268 = vmatpush1.bf16.msra.mxu0 0
    %269 = vmatprep.subr.bf16.mxu0 0
    %270 = vmatpush1.bf16.msra.mxu0 0
    %271 = vmatprep.subr.bf16.mxu0 0
    %272 = vmatpush1.bf16.msra.mxu0 0
    %273 = vmatprep.subr.bf16.mxu0 0
    %274 = vmatpush1.bf16.msra.mxu0 0
    %275 = vmatprep.subr.bf16.mxu0 0
    %276 = vmatpush1.bf16.msra.mxu0 0
    %277 = vmatprep.subr.bf16.mxu0 0
    %278 = vmatpush1.bf16.msra.mxu0 0
    %279 = vmatprep.mubr.bf16.mxu0 0
    %280 = vmatmul.mubr.bf16.gmra.mrb[0].mxu0 %v241
    %v281 = vpop.f32.mrb[0].mxu0
    %v282 = vadd.f32 %v237, %v281
    %v283 = vpop.f32.mrb[0].mxu0
    %v284 = vpop.f32.mrb[0].mxu0
    %v285 = vpop.f32.mrb[0].mxu0
    %286 = vdwg.mxu0
    %v287 = vmax.f32 %v282, 0.0
    %v288 = vpack.c.bf16 %v287, %v287
    %v289 = vpack.c.bf16 %v177, %v176
    %v290 = vpack.c.bf16 %v179, %v178
    %v292 = vlaneseq
    %v293 = vshrl.u32 %v292, 7
    %v294 = vsub.s32 0, %v293
    %v295 = vrot.slane %v180, %v294
    %vm297 = vcmask 261120
    %v299 = vsel %vm297, %v288, 0
    %301 = vmatprep.subr.bf16.mxu0 0
    %302 = vmatpush1.bf16.msra.mxu0 %v289
    %303 = vmatprep.subr.bf16.mxu0 0
    %304 = vmatpush1.bf16.msra.mxu0 %v290
    %305 = vmatprep.subr.bf16.mxu0 0
    %306 = vmatpush1.bf16.msra.mxu0 0
    %307 = vmatprep.subr.bf16.mxu0 0
    %308 = vmatpush1.bf16.msra.mxu0 0
    %309 = vmatprep.subr.bf16.mxu0 0
    %310 = vmatpush1.bf16.msra.mxu0 0
    %311 = vmatprep.subr.bf16.mxu0 0
    %312 = vmatpush1.bf16.msra.mxu0 0
    %313 = vmatprep.subr.bf16.mxu0 0
    %314 = vmatpush1.bf16.msra.mxu0 0
    %315 = vmatprep.subr.bf16.mxu0 0
    %316 = vmatpush1.bf16.msra.mxu0 0
    %317 = vmatprep.subr.bf16.mxu0 0
    %318 = vmatpush1.bf16.msra.mxu0 0
    %319 = vmatprep.subr.bf16.mxu0 0
    %320 = vmatpush1.bf16.msra.mxu0 0
    %321 = vmatprep.subr.bf16.mxu0 0
    %322 = vmatpush1.bf16.msra.mxu0 0
    %323 = vmatprep.subr.bf16.mxu0 0
    %324 = vmatpush1.bf16.msra.mxu0 0
    %325 = vmatprep.subr.bf16.mxu0 0
    %326 = vmatpush1.bf16.msra.mxu0 0
    %327 = vmatprep.subr.bf16.mxu0 0
    %328 = vmatpush1.bf16.msra.mxu0 0
    %329 = vmatprep.subr.bf16.mxu0 0
    %330 = vmatpush1.bf16.msra.mxu0 0
    %331 = vmatprep.subr.bf16.mxu0 0
    %332 = vmatpush1.bf16.msra.mxu0 0
    %333 = vmatprep.mubr.bf16.mxu0 0
    %334 = vmatmul.mubr.bf16.gmra.mrb[0].mxu0 %v299
    %v335 = vpop.f32.mrb[0].mxu0
    %v336 = vadd.f32 %v295, %v335
    %v337 = vpop.f32.mrb[0].mxu0
    %v338 = vpop.f32.mrb[0].mxu0
    %v339 = vpop.f32.mrb[0].mxu0
    %340 = vdwg.mxu0
    %v341 = vmax.f32 %v336, 0.0
    %v342 = vsel %vm297, %v341, 0.0
    %v343 = vrot.slane %v342, 4
    %v344 = vadd.f32 %v342, %v343
    %v345 = vrot.slane %v344, 2
    %v346 = vadd.f32 %v344, %v345
    %v347 = vrot.slane %v346, 1
    %v348 = vadd.f32 %v346, %v347
    %v349 = vrcp.pop 8.0
    %v350 = vmul.f32 %v348, %v349
    %v351 = vsub.f32 %v341, %v350
    %v352 = vmul.f32 %v351, %v351
    %v353 = vsel %vm297, %v352, 0.0
    %v354 = vrot.slane %v353, 4
    %v355 = vadd.f32 %v353, %v354
    %v356 = vrot.slane %v355, 2
    %v357 = vadd.f32 %v355, %v356
    %v358 = vrot.slane %v357, 1
    %v359 = vadd.f32 %v357, %v358
    %v360 = vmul.f32 %v359, %v349
    %v361 = vadd.f32 %v360, 1e-05
    %v362 = vrsqrt.pop %v361
    %v363 = vmul.f32 %v351, %v362
    %v364 = vpack.c.bf16 %v363, %v363
    %v366 = vsel %vm182, %v172, 0
    %v369 = vsel %vm186, %v364, 0
    %371 = vmatprep.subr.bf16.mxu0 0
    %372 = vmatpush1.bf16.msra.mxu0 %v369
    %373 = vmatprep.subr.bf16.mxu0 0
    %374 = vmatpush1.bf16.msra.mxu0 0
    %375 = vmatprep.subr.bf16.mxu0 0
    %376 = vmatpush1.bf16.msra.mxu0 0
    %377 = vmatprep.subr.bf16.mxu0 0
    %378 = vmatpush1.bf16.msra.mxu0 0
    %379 = vmatprep.subr.bf16.mxu0 0
    %380 = vmatpush1.bf16.msra.mxu0 0
    %381 = vmatprep.subr.bf16.mxu0 0
    %382 = vmatpush1.bf16.msra.mxu0 0
    %383 = vmatprep.subr.bf16.mxu0 0
    %384 = vmatpush1.bf16.msra.mxu0 0
    %385 = vmatprep.subr.bf16.mxu0 0
    %386 = vmatpush1.bf16.msra.mxu0 0
    %387 = vmatprep.subr.bf16.mxu0 0
    %388 = vmatpush1.bf16.msra.mxu0 0
    %389 = vmatprep.subr.bf16.mxu0 0
    %390 = vmatpush1.bf16.msra.mxu0 0
    %391 = vmatprep.subr.bf16.mxu0 0
    %392 = vmatpush1.bf16.msra.mxu0 0
    %393 = vmatprep.subr.bf16.mxu0 0
    %394 = vmatpush1.bf16.msra.mxu0 0
    %395 = vmatprep.subr.bf16.mxu0 0
    %396 = vmatpush1.bf16.msra.mxu0 0
    %397 = vmatprep.subr.bf16.mxu0 0
    %398 = vmatpush1.bf16.msra.mxu0 0
    %399 = vmatprep.subr.bf16.mxu0 0
    %400 = vmatpush1.bf16.msra.mxu0 0
    %401 = vmatprep.subr.bf16.mxu0 0
    %402 = vmatpush1.bf16.msra.mxu0 0
    %403 = vmatprep.mubr.bf16.mxu0 0
    %404 = vmatmul.mubr.bf16.gmra.mrb[0].mxu0 %v366
    %v405 = vpop.f32.mrb[0].mxu0
    %v406 = vadd.f32 0.0, %v405
    %v407 = vpop.f32.mrb[0].mxu0
    %v408 = vpop.f32.mrb[0].mxu0
    %v409 = vpop.f32.mrb[0].mxu0
    %410 = vdwg.mxu0
    %vm411 = vcmask 254976
    %412 = vst.msk [vmem:[#allocation17] sm:$0x3] %vm411, %v406
    %v413 = vld [vmem:[%s7] sm:$0xff]
    %v414 = vld [vmem:[%s7 + $0x8] sm:$0xff]
    %v415 = vld [vmem:[%s7 + $0x10] sm:$0xff]
    %v416 = vld [vmem:[%s7 + $0x18] sm:$0xff]
    %v417 = vld [vmem:[#allocation11] sm:$0x1]
    %v418 = vld [vmem:[%s9] sm:$0xff]
    %v419 = vld [vmem:[%s9 + $0x8] sm:$0xff]
    %v420 = vld [vmem:[%s9 + $0x10] sm:$0xff]
    %v421 = vld [vmem:[%s9 + $0x18] sm:$0xff]
    %v422 = vld [vmem:[#allocation13] sm:$0x1]
    %423 = vmatprep.subr.bf16.mxu0 0
    %424 = vmatpush1.bf16.msra.mxu0 %v369
    %425 = vmatprep.subr.bf16.mxu0 0
    %426 = vmatpush1.bf16.msra.mxu0 0
    %427 = vmatprep.subr.bf16.mxu0 0
    %428 = vmatpush1.bf16.msra.mxu0 0
    %429 = vmatprep.subr.bf16.mxu0 0
    %430 = vmatpush1.bf16.msra.mxu0 0
    %431 = vmatprep.subr.bf16.mxu0 0
    %432 = vmatpush1.bf16.msra.mxu0 0
    %433 = vmatprep.subr.bf16.mxu0 0
    %434 = vmatpush1.bf16.msra.mxu0 0
    %435 = vmatprep.subr.bf16.mxu0 0
    %436 = vmatpush1.bf16.msra.mxu0 0
    %437 = vmatprep.subr.bf16.mxu0 0
    %438 = vmatpush1.bf16.msra.mxu0 0
    %439 = vmatprep.subr.bf16.mxu0 0
    %440 = vmatpush1.bf16.msra.mxu0 0
    %441 = vmatprep.subr.bf16.mxu0 0
    %442 = vmatpush1.bf16.msra.mxu0 0
    %443 = vmatprep.subr.bf16.mxu0 0
    %444 = vmatpush1.bf16.msra.mxu0 0
    %445 = vmatprep.subr.bf16.mxu0 0
    %446 = vmatpush1.bf16.msra.mxu0 0
    %447 = vmatprep.subr.bf16.mxu0 0
    %448 = vmatpush1.bf16.msra.mxu0 0
    %449 = vmatprep.subr.bf16.mxu0 0
    %450 = vmatpush1.bf16.msra.mxu0 0
    %451 = vmatprep.subr.bf16.mxu0 0
    %452 = vmatpush1.bf16.msra.mxu0 0
    %453 = vmatprep.subr.bf16.mxu0 0
    %454 = vmatpush1.bf16.msra.mxu0 0
    %455 = vmatprep.mubr.bf16.mxu0 0
    %456 = vmatmul.mubr.bf16.gmra.mrb[0].mxu0 %v184
    %v457 = vpop.f32.mrb[0].mxu0
    %v458 = vadd.f32 0.0, %v457
    %v459 = vpop.f32.mrb[0].mxu0
    %v460 = vpop.f32.mrb[0].mxu0
    %v461 = vpop.f32.mrb[0].mxu0
    %462 = vdwg.mxu0
    %v463 = vadd.f32 %v363, %v458
    %v464 = vpack.c.bf16 %v463, %v463
    %v465 = vpack.c.bf16 %v414, %v413
    %v466 = vpack.c.bf16 %v416, %v415
    %v468 = vlaneseq
    %v469 = vshrl.u32 %v468, 7
    %v470 = vsub.s32 0, %v469
    %v471 = vrot.slane %v417, %v470
    %v474 = vsel %vm297, %v464, 0
    %476 = vmatprep.subr.bf16.mxu0 0
    %477 = vmatpush1.bf16.msra.mxu0 %v465
    %478 = vmatprep.subr.bf16.mxu0 0
    %479 = vmatpush1.bf16.msra.mxu0 %v466
    %480 = vmatprep.subr.bf16.mxu0 0
    %481 = vmatpush1.bf16.msra.mxu0 0
    %482 = vmatprep.subr.bf16.mxu0 0
    %483 = vmatpush1.bf16.msra.mxu0 0
    %484 = vmatprep.subr.bf16.mxu0 0
    %485 = vmatpush1.bf16.msra.mxu0 0
    %486 = vmatprep.subr.bf16.mxu0 0
    %487 = vmatpush1.bf16.msra.mxu0 0
    %488 = vmatprep.subr.bf16.mxu0 0
    %489 = vmatpush1.bf16.msra.mxu0 0
    %490 = vmatprep.subr.bf16.mxu0 0
    %491 = vmatpush1.bf16.msra.mxu0 0
    %492 = vmatprep.subr.bf16.mxu0 0
    %493 = vmatpush1.bf16.msra.mxu0 0
    %494 = vmatprep.subr.bf16.mxu0 0
    %495 = vmatpush1.bf16.msra.mxu0 0
    %496 = vmatprep.subr.bf16.mxu0 0
    %497 = vmatpush1.bf16.msra.mxu0 0
    %498 = vmatprep.subr.bf16.mxu0 0
    %499 = vmatpush1.bf16.msra.mxu0 0
    %500 = vmatprep.subr.bf16.mxu0 0
    %501 = vmatpush1.bf16.msra.mxu0 0
    %502 = vmatprep.subr.bf16.mxu0 0
    %503 = vmatpush1.bf16.msra.mxu0 0
    %504 = vmatprep.subr.bf16.mxu0 0
    %505 = vmatpush1.bf16.msra.mxu0 0
    %506 = vmatprep.subr.bf16.mxu0 0
    %507 = vmatpush1.bf16.msra.mxu0 0
    %508 = vmatprep.mubr.bf16.mxu0 0
    %509 = vmatmul.mubr.bf16.gmra.mrb[0].mxu0 %v474
    %v510 = vpop.f32.mrb[0].mxu0
    %v511 = vadd.f32 %v471, %v510
    %v512 = vpop.f32.mrb[0].mxu0
    %v513 = vpop.f32.mrb[0].mxu0
    %v514 = vpop.f32.mrb[0].mxu0
    %515 = vdwg.mxu0
    %v516 = vmax.f32 %v511, 0.0
    %v517 = vpack.c.bf16 %v516, %v516
    %v518 = vpack.c.bf16 %v419, %v418
    %v519 = vpack.c.bf16 %v421, %v420
    %v521 = vlaneseq
    %v522 = vshrl.u32 %v521, 7
    %v523 = vsub.s32 0, %v522
    %v524 = vrot.slane %v422, %v523
    %v527 = vsel %vm297, %v517, 0
    %529 = vmatprep.subr.bf16.mxu0 0
    %530 = vmatpush1.bf16.msra.mxu0 %v518
    %531 = vmatprep.subr.bf16.mxu0 0
    %532 = vmatpush1.bf16.msra.mxu0 %v519
    %533 = vmatprep.subr.bf16.mxu0 0
    %534 = vmatpush1.bf16.msra.mxu0 0
    %535 = vmatprep.subr.bf16.mxu0 0
    %536 = vmatpush1.bf16.msra.mxu0 0
    %537 = vmatprep.subr.bf16.mxu0 0
    %538 = vmatpush1.bf16.msra.mxu0 0
    %539 = vmatprep.subr.bf16.mxu0 0
    %540 = vmatpush1.bf16.msra.mxu0 0
    %541 = vmatprep.subr.bf16.mxu0 0
    %542 = vmatpush1.bf16.msra.mxu0 0
    %543 = vmatprep.subr.bf16.mxu0 0
    %544 = vmatpush1.bf16.msra.mxu0 0
    %545 = vmatprep.subr.bf16.mxu0 0
    %546 = vmatpush1.bf16.msra.mxu0 0
    %547 = vmatprep.subr.bf16.mxu0 0
    %548 = vmatpush1.bf16.msra.mxu0 0
    %549 = vmatprep.subr.bf16.mxu0 0
    %550 = vmatpush1.bf16.msra.mxu0 0
    %551 = vmatprep.subr.bf16.mxu0 0
    %552 = vmatpush1.bf16.msra.mxu0 0
    %553 = vmatprep.subr.bf16.mxu0 0
    %554 = vmatpush1.bf16.msra.mxu0 0
    %555 = vmatprep.subr.bf16.mxu0 0
    %556 = vmatpush1.bf16.msra.mxu0 0
    %557 = vmatprep.subr.bf16.mxu0 0
    %558 = vmatpush1.bf16.msra.mxu0 0
    %559 = vmatprep.subr.bf16.mxu0 0
    %560 = vmatpush1.bf16.msra.mxu0 0
    %561 = vmatprep.mubr.bf16.mxu0 0
    %562 = vmatmul.mubr.bf16.gmra.mrb[0].mxu0 %v527
    %v563 = vpop.f32.mrb[0].mxu0
    %v564 = vadd.f32 %v524, %v563
    %v565 = vpop.f32.mrb[0].mxu0
    %v566 = vpop.f32.mrb[0].mxu0
    %v567 = vpop.f32.mrb[0].mxu0
    %568 = vdwg.mxu0
    %v569 = vmax.f32 %v564, 0.0
    %v570 = vsel %vm297, %v569, 0.0
    %v571 = vrot.slane %v570, 4
    %v572 = vadd.f32 %v570, %v571
    %v573 = vrot.slane %v572, 2
    %v574 = vadd.f32 %v572, %v573
    %v575 = vrot.slane %v574, 1
    %v576 = vadd.f32 %v574, %v575
    %v577 = vmul.f32 %v576, %v349
    %v578 = vsub.f32 %v569, %v577
    %v579 = vmul.f32 %v578, %v578
    %v580 = vsel %vm297, %v579, 0.0
    %v581 = vrot.slane %v580, 4
    %v582 = vadd.f32 %v580, %v581
    %v583 = vrot.slane %v582, 2
    %v584 = vadd.f32 %v582, %v583
    %v585 = vrot.slane %v584, 1
    %v586 = vadd.f32 %v584, %v585
    %v587 = vmul.f32 %v586, %v349
    %v588 = vadd.f32 %v587, 1e-05
    %v589 = vrsqrt.pop %v588
    %v590 = vmul.f32 %v578, %v589
    %v591 = vpack.c.bf16 %v590, %v590
    %v593 = vsel %vm186, %v591, 0
    %595 = vmatprep.subr.bf16.mxu0 0
    %596 = vmatpush1.bf16.msra.mxu0 %v593
    %597 = vmatprep.subr.bf16.mxu0 0
    %598 = vmatpush1.bf16.msra.mxu0 0
    %599 = vmatprep.subr.bf16.mxu0 0
    %600 = vmatpush1.bf16.msra.mxu0 0
    %601 = vmatprep.subr.bf16.mxu0 0
    %602 = vmatpush1.bf16.msra.mxu0 0
    %603 = vmatprep.subr.bf16.mxu0 0
    %604 = vmatpush1.bf16.msra.mxu0 0
    %605 = vmatprep.subr.bf16.mxu0 0
    %606 = vmatpush1.bf16.msra.mxu0 0
    %607 = vmatprep.subr.bf16.mxu0 0
    %608 = vmatpush1.bf16.msra.mxu0 0
    %609 = vmatprep.subr.bf16.mxu0 0
    %610 = vmatpush1.bf16.msra.mxu0 0
    %611 = vmatprep.subr.bf16.mxu0 0
    %612 = vmatpush1.bf16.msra.mxu0 0
    %613 = vmatprep.subr.bf16.mxu0 0
    %614 = vmatpush1.bf16.msra.mxu0 0
    %615 = vmatprep.subr.bf16.mxu0 0
    %616 = vmatpush1.bf16.msra.mxu0 0
    %617 = vmatprep.subr.bf16.mxu0 0
    %618 = vmatpush1.bf16.msra.mxu0 0
    %619 = vmatprep.subr.bf16.mxu0 0
    %620 = vmatpush1.bf16.msra.mxu0 0
    %621 = vmatprep.subr.bf16.mxu0 0
    %622 = vmatpush1.bf16.msra.mxu0 0
    %623 = vmatprep.subr.bf16.mxu0 0
    %624 = vmatpush1.bf16.msra.mxu0 0
    %625 = vmatprep.subr.bf16.mxu0 0
    %626 = vmatpush1.bf16.msra.mxu0 0
    %627 = vmatprep.mubr.bf16.mxu0 0
    %628 = vmatmul.mubr.bf16.gmra.mrb[0].mxu0 %v366
    %v629 = vpop.f32.mrb[0].mxu0
    %v630 = vadd.f32 0.0, %v629
    %v631 = vpop.f32.mrb[0].mxu0
    %v632 = vpop.f32.mrb[0].mxu0
    %v633 = vpop.f32.mrb[0].mxu0
    %634 = vdwg.mxu0
    %636 = vrot.lane.b32.xlu0 %v630, 32
    %v637 = vpop.permute.xlu0 %636
    %vm639 = vcmask 517376
    %640 = vst.msk [vmem:[#allocation17] sm:$0x3] %vm639, %v637
    %v641 = vld [vmem:[%s11] sm:$0xff]
    %v642 = vld [vmem:[%s11 + $0x8] sm:$0xff]
    %v643 = vld [vmem:[%s11 + $0x10] sm:$0xff]
    %v644 = vld [vmem:[%s11 + $0x18] sm:$0xff]
    %v645 = vld [vmem:[#allocation14] sm:$0x1]
    %v646 = vld [vmem:[%s13] sm:$0xff]
    %v647 = vld [vmem:[%s13 + $0x8] sm:$0xff]
    %v648 = vld [vmem:[%s13 + $0x10] sm:$0xff]
    %v649 = vld [vmem:[%s13 + $0x18] sm:$0xff]
    %v650 = vld [vmem:[#allocation16] sm:$0x1]
    %651 = vmatprep.subr.bf16.mxu0 0
    %652 = vmatpush1.bf16.msra.mxu0 %v593
    %653 = vmatprep.subr.bf16.mxu0 0
    %654 = vmatpush1.bf16.msra.mxu0 0
    %655 = vmatprep.subr.bf16.mxu0 0
    %656 = vmatpush1.bf16.msra.mxu0 0
    %657 = vmatprep.subr.bf16.mxu0 0
    %658 = vmatpush1.bf16.msra.mxu0 0
    %659 = vmatprep.subr.bf16.mxu0 0
    %660 = vmatpush1.bf16.msra.mxu0 0
    %661 = vmatprep.subr.bf16.mxu0 0
    %662 = vmatpush1.bf16.msra.mxu0 0
    %663 = vmatprep.subr.bf16.mxu0 0
    %664 = vmatpush1.bf16.msra.mxu0 0
    %665 = vmatprep.subr.bf16.mxu0 0
    %666 = vmatpush1.bf16.msra.mxu0 0
    %667 = vmatprep.subr.bf16.mxu0 0
    %668 = vmatpush1.bf16.msra.mxu0 0
    %669 = vmatprep.subr.bf16.mxu0 0
    %670 = vmatpush1.bf16.msra.mxu0 0
    %671 = vmatprep.subr.bf16.mxu0 0
    %672 = vmatpush1.bf16.msra.mxu0 0
    %673 = vmatprep.subr.bf16.mxu0 0
    %674 = vmatpush1.bf16.msra.mxu0 0
    %675 = vmatprep.subr.bf16.mxu0 0
    %676 = vmatpush1.bf16.msra.mxu0 0
    %677 = vmatprep.subr.bf16.mxu0 0
    %678 = vmatpush1.bf16.msra.mxu0 0
    %679 = vmatprep.subr.bf16.mxu0 0
    %680 = vmatpush1.bf16.msra.mxu0 0
    %681 = vmatprep.subr.bf16.mxu0 0
    %682 = vmatpush1.bf16.msra.mxu0 0
    %683 = vmatprep.mubr.bf16.mxu0 0
    %684 = vmatmul.mubr.bf16.gmra.mrb[0].mxu0 %v184
    %v685 = vpop.f32.mrb[0].mxu0
    %v686 = vadd.f32 0.0, %v685
    %v687 = vpop.f32.mrb[0].mxu0
    %v688 = vpop.f32.mrb[0].mxu0
    %v689 = vpop.f32.mrb[0].mxu0
    %690 = vdwg.mxu0
    %v691 = vadd.f32 %v590, %v686
    %v692 = vpack.c.bf16 %v691, %v691
    %v693 = vpack.c.bf16 %v642, %v641
    %v694 = vpack.c.bf16 %v644, %v643
    %v696 = vlaneseq
    %v697 = vshrl.u32 %v696, 7
    %v698 = vsub.s32 0, %v697
    %v699 = vrot.slane %v645, %v698
    %v702 = vsel %vm297, %v692, 0
    %704 = vmatprep.subr.bf16.mxu0 0
    %705 = vmatpush1.bf16.msra.mxu0 %v693
    %706 = vmatprep.subr.bf16.mxu0 0
    %707 = vmatpush1.bf16.msra.mxu0 %v694
    %708 = vmatprep.subr.bf16.mxu0 0
    %709 = vmatpush1.bf16.msra.mxu0 0
    %710 = vmatprep.subr.bf16.mxu0 0
    %711 = vmatpush1.bf16.msra.mxu0 0
    %712 = vmatprep.subr.bf16.mxu0 0
    %713 = vmatpush1.bf16.msra.mxu0 0
    %714 = vmatprep.subr.bf16.mxu0 0
    %715 = vmatpush1.bf16.msra.mxu0 0
    %716 = vmatprep.subr.bf16.mxu0 0
    %717 = vmatpush1.bf16.msra.mxu0 0
    %718 = vmatprep.subr.bf16.mxu0 0
    %719 = vmatpush1.bf16.msra.mxu0 0
    %720 = vmatprep.subr.bf16.mxu0 0
    %721 = vmatpush1.bf16.msra.mxu0 0
    %722 = vmatprep.subr.bf16.mxu0 0
    %723 = vmatpush1.bf16.msra.mxu0 0
    %724 = vmatprep.subr.bf16.mxu0 0
    %725 = vmatpush1.bf16.msra.mxu0 0
    %726 = vmatprep.subr.bf16.mxu0 0
    %727 = vmatpush1.bf16.msra.mxu0 0
    %728 = vmatprep.subr.bf16.mxu0 0
    %729 = vmatpush1.bf16.msra.mxu0 0
    %730 = vmatprep.subr.bf16.mxu0 0
    %731 = vmatpush1.bf16.msra.mxu0 0
    %732 = vmatprep.subr.bf16.mxu0 0
    %733 = vmatpush1.bf16.msra.mxu0 0
    %734 = vmatprep.subr.bf16.mxu0 0
    %735 = vmatpush1.bf16.msra.mxu0 0
    %736 = vmatprep.mubr.bf16.mxu0 0
    %737 = vmatmul.mubr.bf16.gmra.mrb[0].mxu0 %v702
    %v738 = vpop.f32.mrb[0].mxu0
    %v739 = vadd.f32 %v699, %v738
    %v740 = vpop.f32.mrb[0].mxu0
    %v741 = vpop.f32.mrb[0].mxu0
    %v742 = vpop.f32.mrb[0].mxu0
    %743 = vdwg.mxu0
    %v744 = vmax.f32 %v739, 0.0
    %v745 = vpack.c.bf16 %v744, %v744
    %v746 = vpack.c.bf16 %v647, %v646
    %v747 = vpack.c.bf16 %v649, %v648
    %v749 = vlaneseq
    %v750 = vshrl.u32 %v749, 7
    %v751 = vsub.s32 0, %v750
    %v752 = vrot.slane %v650, %v751
    %v755 = vsel %vm297, %v745, 0
    %757 = vmatprep.subr.bf16.mxu0 0
    %758 = vmatpush1.bf16.msra.mxu0 %v746
    %759 = vmatprep.subr.bf16.mxu0 0
    %760 = vmatpush1.bf16.msra.mxu0 %v747
    %761 = vmatprep.subr.bf16.mxu0 0
    %762 = vmatpush1.bf16.msra.mxu0 0
    %763 = vmatprep.subr.bf16.mxu0 0
    %764 = vmatpush1.bf16.msra.mxu0 0
    %765 = vmatprep.subr.bf16.mxu0 0
    %766 = vmatpush1.bf16.msra.mxu0 0
    %767 = vmatprep.subr.bf16.mxu0 0
    %768 = vmatpush1.bf16.msra.mxu0 0
    %769 = vmatprep.subr.bf16.mxu0 0
    %770 = vmatpush1.bf16.msra.mxu0 0
    %771 = vmatprep.subr.bf16.mxu0 0
    %772 = vmatpush1.bf16.msra.mxu0 0
    %773 = vmatprep.subr.bf16.mxu0 0
    %774 = vmatpush1.bf16.msra.mxu0 0
    %775 = vmatprep.subr.bf16.mxu0 0
    %776 = vmatpush1.bf16.msra.mxu0 0
    %777 = vmatprep.subr.bf16.mxu0 0
    %778 = vmatpush1.bf16.msra.mxu0 0
    %779 = vmatprep.subr.bf16.mxu0 0
    %780 = vmatpush1.bf16.msra.mxu0 0
    %781 = vmatprep.subr.bf16.mxu0 0
    %782 = vmatpush1.bf16.msra.mxu0 0
    %783 = vmatprep.subr.bf16.mxu0 0
    %784 = vmatpush1.bf16.msra.mxu0 0
    %785 = vmatprep.subr.bf16.mxu0 0
    %786 = vmatpush1.bf16.msra.mxu0 0
    %787 = vmatprep.subr.bf16.mxu0 0
    %788 = vmatpush1.bf16.msra.mxu0 0
    %789 = vmatprep.mubr.bf16.mxu0 0
    %790 = vmatmul.mubr.bf16.gmra.mrb[0].mxu0 %v755
    %v791 = vpop.f32.mrb[0].mxu0
    %v792 = vadd.f32 %v752, %v791
    %v793 = vpop.f32.mrb[0].mxu0
    %v794 = vpop.f32.mrb[0].mxu0
    %v795 = vpop.f32.mrb[0].mxu0
    %796 = vdwg.mxu0
    %v797 = vmax.f32 %v792, 0.0
    %v798 = vsel %vm297, %v797, 0.0
    %v799 = vrot.slane %v798, 4
    %v800 = vadd.f32 %v798, %v799
    %v801 = vrot.slane %v800, 2
    %v802 = vadd.f32 %v800, %v801
    %v803 = vrot.slane %v802, 1
    %v804 = vadd.f32 %v802, %v803
    %v805 = vmul.f32 %v804, %v349
    %v806 = vsub.f32 %v797, %v805
    %v807 = vmul.f32 %v806, %v806
    %v808 = vsel %vm297, %v807, 0.0
    %v809 = vrot.slane %v808, 4
    %v810 = vadd.f32 %v808, %v809
    %v811 = vrot.slane %v810, 2
    %v812 = vadd.f32 %v810, %v811
    %v813 = vrot.slane %v812, 1
    %v814 = vadd.f32 %v812, %v813
    %v815 = vmul.f32 %v814, %v349
    %v816 = vadd.f32 %v815, 1e-05
    %v817 = vrsqrt.pop %v816
    %v818 = vmul.f32 %v806, %v817
    %v819 = vpack.c.bf16 %v818, %v818
    %v821 = vsel %vm186, %v819, 0
    %823 = vmatprep.subr.bf16.mxu0 0
    %824 = vmatpush1.bf16.msra.mxu0 %v821
    %825 = vmatprep.subr.bf16.mxu0 0
    %826 = vmatpush1.bf16.msra.mxu0 0
    %827 = vmatprep.subr.bf16.mxu0 0
    %828 = vmatpush1.bf16.msra.mxu0 0
    %829 = vmatprep.subr.bf16.mxu0 0
    %830 = vmatpush1.bf16.msra.mxu0 0
    %831 = vmatprep.subr.bf16.mxu0 0
    %832 = vmatpush1.bf16.msra.mxu0 0
    %833 = vmatprep.subr.bf16.mxu0 0
    %834 = vmatpush1.bf16.msra.mxu0 0
    %835 = vmatprep.subr.bf16.mxu0 0
    %836 = vmatpush1.bf16.msra.mxu0 0
    %837 = vmatprep.subr.bf16.mxu0 0
    %838 = vmatpush1.bf16.msra.mxu0 0
    %839 = vmatprep.subr.bf16.mxu0 0
    %840 = vmatpush1.bf16.msra.mxu0 0
    %841 = vmatprep.subr.bf16.mxu0 0
    %842 = vmatpush1.bf16.msra.mxu0 0
    %843 = vmatprep.subr.bf16.mxu0 0
    %844 = vmatpush1.bf16.msra.mxu0 0
    %845 = vmatprep.subr.bf16.mxu0 0
    %846 = vmatpush1.bf16.msra.mxu0 0
    %847 = vmatprep.subr.bf16.mxu0 0
    %848 = vmatpush1.bf16.msra.mxu0 0
    %849 = vmatprep.subr.bf16.mxu0 0
    %850 = vmatpush1.bf16.msra.mxu0 0
    %851 = vmatprep.subr.bf16.mxu0 0
    %852 = vmatpush1.bf16.msra.mxu0 0
    %853 = vmatprep.subr.bf16.mxu0 0
    %854 = vmatpush1.bf16.msra.mxu0 0
    %855 = vmatprep.mubr.bf16.mxu0 0
    %856 = vmatmul.mubr.bf16.gmra.mrb[0].mxu0 %v366
    %v857 = vpop.f32.mrb[0].mxu0
    %v858 = vadd.f32 0.0, %v857
    %v859 = vpop.f32.mrb[0].mxu0
    %v860 = vpop.f32.mrb[0].mxu0
    %v861 = vpop.f32.mrb[0].mxu0
    %862 = vdwg.mxu0
    %864 = vrot.lane.b32.xlu0 %v858, 64
    %v865 = vpop.permute.xlu0 %864
    %vm867 = vcmask 779776
    %868 = vst.msk [vmem:[#allocation17] sm:$0x3] %vm867, %v865
    %v869 = vld [vmem:[#allocation17] sm:$0x3]
    %v870 = vld [vmem:[%s15] sm:$0xff]
    %v871 = vld [vmem:[%s15 + $0x8] sm:$0xff]
    %v872 = vld [vmem:[%s15 + $0x10] sm:$0xff]
    %v873 = vld [vmem:[%s15 + $0x18] sm:$0xff]
    %v874 = vld [vmem:[%s15 + $0x20] sm:$0xff]
    %v875 = vld [vmem:[%s15 + $0x28] sm:$0xff]
    %v876 = vld [vmem:[%s15 + $0x30] sm:$0xff]
    %v877 = vld [vmem:[%s15 + $0x38] sm:$0xff]
    %v878 = vld [vmem:[%s15 + $0x40] sm:$0xff]
    %v879 = vld [vmem:[%s15 + $0x48] sm:$0xff]
    %v880 = vld [vmem:[%s15 + $0x50] sm:$0xff]
    %v881 = vld [vmem:[%s15 + $0x58] sm:$0xff]
    %v882 = vpack.c.bf16 %v869, %v869
    %v883 = vpack.c.bf16 %v871, %v870
    %v884 = vpack.c.bf16 %v873, %v872
    %v885 = vpack.c.bf16 %v875, %v874
    %v886 = vpack.c.bf16 %v877, %v876
    %v887 = vpack.c.bf16 %v879, %v878
    %v888 = vpack.c.bf16 %v881, %v880
    %vm889 = vcmask 785408
    %v891 = vsel %vm889, %v882, 0
    %893 = vmatprep.subr.bf16.mxu0 0
    %894 = vmatpush1.bf16.msra.mxu0 %v883
    %895 = vmatprep.subr.bf16.mxu0 0
    %896 = vmatpush1.bf16.msra.mxu0 %v884
    %897 = vmatprep.subr.bf16.mxu0 0
    %898 = vmatpush1.bf16.msra.mxu0 %v885
    %899 = vmatprep.subr.bf16.mxu0 0
    %900 = vmatpush1.bf16.msra.mxu0 %v886
    %901 = vmatprep.subr.bf16.mxu0 0
    %902 = vmatpush1.bf16.msra.mxu0 %v887
    %903 = vmatprep.subr.bf16.mxu0 0
    %904 = vmatpush1.bf16.msra.mxu0 %v888
    %905 = vmatprep.subr.bf16.mxu0 0
    %906 = vmatpush1.bf16.msra.mxu0 0
    %907 = vmatprep.subr.bf16.mxu0 0
    %908 = vmatpush1.bf16.msra.mxu0 0
    %909 = vmatprep.subr.bf16.mxu0 0
    %910 = vmatpush1.bf16.msra.mxu0 0
    %911 = vmatprep.subr.bf16.mxu0 0
    %912 = vmatpush1.bf16.msra.mxu0 0
    %913 = vmatprep.subr.bf16.mxu0 0
    %914 = vmatpush1.bf16.msra.mxu0 0
    %915 = vmatprep.subr.bf16.mxu0 0
    %916 = vmatpush1.bf16.msra.mxu0 0
    %917 = vmatprep.subr.bf16.mxu0 0
    %918 = vmatpush1.bf16.msra.mxu0 0
    %919 = vmatprep.subr.bf16.mxu0 0
    %920 = vmatpush1.bf16.msra.mxu0 0
    %921 = vmatprep.subr.bf16.mxu0 0
    %922 = vmatpush1.bf16.msra.mxu0 0
    %923 = vmatprep.subr.bf16.mxu0 0
    %924 = vmatpush1.bf16.msra.mxu0 0
    %925 = vmatprep.mubr.bf16.mxu0 0
    %926 = vmatmul.mubr.bf16.gmra.mrb[0].mxu0 %v891
    %v927 = vpop.f32.mrb[0].mxu0
    %v928 = vadd.f32 0.0, %v927
    %v929 = vpop.f32.mrb[0].mxu0
    %v930 = vpop.f32.mrb[0].mxu0
    %v931 = vpop.f32.mrb[0].mxu0
    %932 = vdwg.mxu0
    %vm933 = vcmask 74752
    %934 = vst.msk [vmem:[#allocation18] sm:$0x3] %vm933, %v928
    // Predicated region
    $region102: #{tpu_custom_call.1} parent=1 // pred_check
      _
    $region103: #{tpu_custom_call.1} parent=1 // pred_check_branch
      %936 = sbr.rel (0) target = $region105
    $region104: #{tpu_custom_call.1} parent=1 // pred_region
      %s938 = ssub.s32 32, 32
      %939 = vsyncadd [#allocation4], %s938
      %s941 = sshll.u32 [#allocation17], 4
      %s942 = int_to_ptr.vmem [resolvable:$true] %s941
      %944 = dma.vmem_to_hbm [thread:$0]  %s942, 32, %s16, [#allocation4]
    $region105: #{tpu_custom_call.1} parent=1 // pred_fallthru
      _
    // Predicated region
    $region106: #{tpu_custom_call.1} parent=1 // pred_check
      _
    $region107: #{tpu_custom_call.1} parent=1 // pred_check_branch
      %946 = sbr.rel (0) target = $region109
    $region108: #{tpu_custom_call.1} parent=1 // pred_region
      %s948 = ssub.s32 32, 32
      %949 = vsyncadd [#allocation19], %s948
      %s951 = sshll.u32 [#allocation18], 4
      %s952 = int_to_ptr.vmem [resolvable:$true] %s951
      %954 = dma.vmem_to_hbm [thread:$0]  %s952, 32, %s17, [#allocation19]
    $region109: #{tpu_custom_call.1} parent=1 // pred_fallthru
      _
    // Predicated region
    $region110: #{tpu_custom_call.1} parent=1 // pred_check
      _
    $region111: #{tpu_custom_call.1} parent=1 // pred_check_branch
      %956 = sbr.rel (0) target = $region113
    $region112: #{tpu_custom_call.1} parent=1 // pred_region
      %957 = dma.done [#allocation4], 32
    $region113: #{tpu_custom_call.1} parent=1 // pred_fallthru
      _
    // Predicated region
    $region114: #{tpu_custom_call.1} parent=1 // pred_check
      _
    $region115: #{tpu_custom_call.1} parent=1 // pred_check_branch
      %959 = sbr.rel (0) target = $region117
    $region116: #{tpu_custom_call.1} parent=1 // pred_region
      %960 = dma.done [#allocation19], 32
    $region117: #{tpu_custom_call.1} parent=1 // pred_fallthru
      _
    %961 = vsyncpa [#allocation3], 1
    %962 = vsyncpa [#allocation6], 1
    %963 = vsyncpa [#allocation9], 1
    %964 = vsyncpa [#allocation12], 1
    %965 = vsyncpa [#allocation15], 1
    %966 = vsyncpa [#allocation4], 1
    %967 = vsyncpa [#allocation19], 1

</llo_original>
